<compile_context>
chip_gen: v7x
topology: tpu7x:2x2x1
jax: 0.10.0
libtpu: 0.0.40
codegen_flags: <defaults>
</compile_context>

<pallas_src>
import functools
import math

import jax
import jax.numpy as jnp
from jax import lax
from jax.experimental import pallas as pl
from jax.experimental.pallas import tpu as pltpu


def _round_up(v, m):
    return (v + m - 1) // m * m


def _shift_lanes(x, d):
    """y[..., i] = x[..., (i + d) mod N] for a static integer d.

    Built from two static lane slices + a concat (proven to lower both on
    hardware and under the TPU interpret mode).  NOTE: on hardware
    pltpu.roll(x, shift=-d, axis=-1) is the single-XLU-op equivalent.
    """
    n = x.shape[-1]
    d = d % n
    if d == 0:
        return x
    return jnp.concatenate([x[..., d:], x[..., :d]], axis=-1)


def _ssa_kernel(scal_ref, wf_ref, planes_ref, x_ref, o_ref, *, C, W):
    # scal_ref:   SMEM f32[4]          [0] bn_scale, [1] bn_shift, [2] w_1x1
    # wf_ref:     VMEM f32[Fp, Cp]     attention 1x1 weights (zero padded)
    # planes_ref: VMEM f32[9, N]       3x3 tap * boundary-mask planes (resident)
    # x_ref:      VMEM f32[Cp, N]      N = Bt*H*W, batch folded into lanes
    # o_ref:      VMEM f32[Fp, N]
    x = x_ref[...]                                           # [Cp, N]

    # ---- channel mean (padded channels are zero; divide by the true C) -----
    m = jnp.sum(x, axis=0, keepdims=True) * (1.0 / C)        # [1, N]

    # ---- 3x3 "same" zero-padded conv on the flat (b, h, w) lane axis -------
    # planes_ref[k] already holds tap_k * valid_mask_k; the masks are built
    # per HW segment, so shifts never leak across batch boundaries.
    acc = planes_ref[pl.ds(4, 1), :] * m                     # center tap
    for oy in (-1, 0, 1):
        for ox in (-1, 0, 1):
            if oy == 0 and ox == 0:
                continue
            k = (oy + 1) * 3 + (ox + 1)
            acc = acc + planes_ref[pl.ds(k, 1), :] * _shift_lanes(m, oy * W + ox)

    # ---- folded BN (inference) + ReLU + scalar 1x1 conv + exact sigmoid ----
    t = acc * scal_ref[0] + scal_ref[1]
    t = jnp.maximum(t, 0.0) * scal_ref[2]
    s = 1.0 / (1.0 + jnp.exp(-t))                            # [1, N]

    # ---- broadcast add over channels + attention 1x1 conv (one MXU dot) ----
    g = x + s                                                # [Cp, N]
    att = jnp.dot(wf_ref[...], g,
                  preferred_element_type=jnp.float32,
                  precision=jax.lax.Precision.HIGHEST)       # [Fp, N]
    o_ref[...] = 1.0 / (1.0 + jnp.exp(-att))                 # one lane-dense store


def _pick_batch_tile(B, Cp, Fp, HW, target_bytes=2 * 1024 * 1024):
    """Batch rows per grid step: big enough to amortize the ~0.35us/step
    pipeline overhead, small enough for every generation's scoped-VMEM default
    (v5e 16 MiB / v6e 32 MiB / v7x 32-of-64 MiB) with double buffering, and
    leaving >= 2 grid steps so both v7x TensorCores get work."""
    per_batch = (Cp + Fp) * HW * 4            # in + out bytes per batch row
    bt = max(1, target_bytes // per_batch)
    if B >= 2:
        bt = min(bt, (B + 1) // 2)            # keep grid length >= 2
    return int(min(bt, B))


def scale_spatial_attention(x, w3, w1, wf, bn_gamma, bn_beta, bn_mean, bn_var,
                            eps=1e-5):
    """x: [B, C, H, W] f32 (NCHW). Returns [B, F, H, W] f32."""
    x = x.astype(jnp.float32)
    B, C, H, W = x.shape
    F = wf.shape[0]
    HW = H * W
    Cp = _round_up(C, 8)          # == C when already a sublane multiple
    Fp = _round_up(F, 8)          # == F when already a sublane multiple
    Bt = _pick_batch_tile(B, Cp, Fp, HW)
    Bp = _round_up(B, Bt)
    n_steps = Bp // Bt
    N = Bt * HW                   # flat lane axis per grid step

    # ---- scalar params: folded inference BN + the 1-channel 1x1 conv -------
    bn_scale = bn_gamma[0] / jnp.sqrt(bn_var[0] + eps)
    bn_shift = bn_beta[0] - bn_mean[0] * bn_scale
    scal = jnp.stack([bn_scale, bn_shift, w1.reshape(()),
                      jnp.zeros((), jnp.float32)]).astype(jnp.float32)   # f32[4]

    # ---- 3x3 taps folded with their zero-padding boundary masks ------------
    yy = jnp.arange(H, dtype=jnp.int32)[:, None]
    xx = jnp.arange(W, dtype=jnp.int32)[None, :]
    w9 = w3.reshape(3, 3).astype(jnp.float32)
    planes = []
    for oy in (-1, 0, 1):
        for ox in (-1, 0, 1):
            valid = ((yy + oy >= 0) & (yy + oy < H) &
                     (xx + ox >= 0) & (xx + ox < W))
            planes.append(valid.astype(jnp.float32) * w9[oy + 1, ox + 1])
    planes = jnp.stack(planes, axis=0).reshape(9, HW)
    planes = jnp.tile(planes, (1, Bt))                                   # [9, N]

    # ---- lane-dense layout: [Cp, Bp*HW], batch-major flat spatial axis -----
    xq = jnp.pad(x, ((0, Bp - B), (0, 0), (0, 0), (0, 0)))
    xq = xq.transpose(1, 0, 2, 3).reshape(C, Bp * HW)
    xq = jnp.pad(xq, ((0, Cp - C), (0, 0)))                              # [Cp, Bp*HW]
    wf2 = jnp.pad(wf.reshape(F, C).astype(jnp.float32),
                  ((0, Fp - F), (0, Cp - C)))                            # [Fp, Cp]

    kernel = functools.partial(_ssa_kernel, C=C, W=W)
    out = pl.pallas_call(
        kernel,
        out_shape=jax.ShapeDtypeStruct((Fp, Bp * HW), jnp.float32),
        grid=(n_steps,),
        in_specs=[
            pl.BlockSpec(memory_space=pltpu.MemorySpace.SMEM),   # scalar params
            pl.BlockSpec((Fp, Cp), lambda i: (0, 0)),            # attention weights
            pl.BlockSpec((9, N), lambda i: (0, 0)),              # masked tap planes
            pl.BlockSpec((Cp, N), lambda i: (0, i)),             # x, multi-batch slab
        ],
        out_specs=pl.BlockSpec((Fp, N), lambda i: (0, i)),
        compiler_params=pltpu.CompilerParams(
            dimension_semantics=("parallel",)),
    )(scal, wf2, planes, xq)

    out = out.reshape(Fp, Bp, H, W).transpose(1, 0, 2, 3)        # [Bp, Fp, H, W]
    if Bp != B:
        out = out[:B]
    if Fp != F:
        out = out[:, :F]
    return out


def reference(x, w3, w1, wf, bn_gamma, bn_beta, bn_mean, bn_var, eps=1e-5):
    """Plain-JAX reference of the PyTorch forward (eval-mode BN)."""
    m = jnp.mean(x, axis=1, keepdims=True)                           # [B,1,H,W]
    conv = lax.conv_general_dilated(
        m, w3, window_strides=(1, 1), padding=((1, 1), (1, 1)),
        dimension_numbers=("NCHW", "OIHW", "NCHW"),
        precision=jax.lax.Precision.HIGHEST)
    bn = (conv - bn_mean.reshape(1, 1, 1, 1)) / jnp.sqrt(
        bn_var.reshape(1, 1, 1, 1) + eps) * bn_gamma.reshape(1, 1, 1, 1) \
        + bn_beta.reshape(1, 1, 1, 1)
    r = jnp.maximum(bn, 0.0) * w1.reshape(())
    s = jax.nn.sigmoid(r)
    g = s + x
    F, C = wf.shape[0], wf.shape[1]
    att = jnp.einsum("fc,bchw->bfhw", wf.reshape(F, C), g,
                     precision=jax.lax.Precision.HIGHEST)
    return jax.nn.sigmoid(att)


if __name__ == "__main__":
    B, C, H, W = 2, 4, 16, 16
    in_planes, out_planes, num_features = C, 8, 8   # out_planes only feeds the unused channel_wise branch

    key = jax.random.PRNGKey(0)
    k1, k2, k3, kx = jax.random.split(key, 4)

    # kaiming_normal_(mode='fan_out', nonlinearity='relu'): std = sqrt(2 / fan_out)
    w3 = jax.random.normal(k1, (1, 1, 3, 3), jnp.float32) * math.sqrt(2.0 / (1 * 3 * 3))
    w1 = jax.random.normal(k2, (1, 1, 1, 1), jnp.float32) * math.sqrt(2.0 / (1 * 1 * 1))
    wf = jax.random.normal(k3, (num_features, in_planes, 1, 1), jnp.float32) \
        * math.sqrt(2.0 / (num_features * 1 * 1))

    bn_gamma = jnp.ones((1,), jnp.float32)
    bn_beta = jnp.zeros((1,), jnp.float32)
    bn_mean = jnp.zeros((1,), jnp.float32)
    bn_var = jnp.ones((1,), jnp.float32)

    x = jax.random.normal(kx, (B, C, H, W), jnp.float32)

    out = scale_spatial_attention(x, w3, w1, wf, bn_gamma, bn_beta, bn_mean, bn_var)
    out = jax.block_until_ready(out)

    ref = reference(x, w3, w1, wf, bn_gamma, bn_beta, bn_mean, bn_var)
    assert out.shape == (B, num_features, H, W), out.shape
    assert bool(jnp.allclose(out, ref, atol=1e-3, rtol=1e-3)), "kernel/reference mismatch"

    print("KERNEL_OK")
</pallas_src>

<mosaic_0001>
module attributes {stable_mosaic.version = 11 : i64} {
  func.func @_ssa_kernel(%arg0: i32, %arg1: memref<4xf32, #tpu.memory_space<smem>>, %arg2: memref<8x8xf32, #tpu.memory_space<vmem>>, %arg3: memref<9x256xf32, #tpu.memory_space<vmem>>, %arg4: memref<8x256xf32, #tpu.memory_space<vmem>>, %arg5: memref<8x256xf32, #tpu.memory_space<vmem>>) attributes {dimension_semantics = [#tpu.dimension_semantics<parallel>], iteration_bounds = array<i64: 2>, scalar_prefetch = 0 : i64, scratch_operands = 0 : i64, tpu.core_type = #tpu.core_type<tc>, window_params = [{transform_indices = @transform_0, window_bounds = array<i64: 4>}, {pipeline_mode = #tpu.pipeline_mode<synchronous>, transform_indices = @transform_1, window_bounds = array<i64: 8, 8>}, {pipeline_mode = #tpu.pipeline_mode<synchronous>, transform_indices = @transform_2, window_bounds = array<i64: 9, 256>}, {transform_indices = @transform_3, window_bounds = array<i64: 8, 256>}, {transform_indices = @transform_4, window_bounds = array<i64: 8, 256>}]} {
    %c0 = arith.constant 0 : index
    %c0_0 = arith.constant 0 : index
    %0 = vector.load %arg4[%c0, %c0_0] : memref<8x256xf32, #tpu.memory_space<vmem>>, vector<8x256xf32>
    %cst = arith.constant dense<0.000000e+00> : vector<256xf32>
    %1 = vector.multi_reduction <add>, %0, %cst [0] : vector<8x256xf32> to vector<256xf32>
    %2 = vector.shape_cast %1 : vector<256xf32> to vector<1x256xf32>
    %cst_1 = arith.constant 2.500000e-01 : f32
    %3 = vector.broadcast %cst_1 : f32 to vector<1x256xf32>
    %4 = arith.mulf %2, %3 : vector<1x256xf32>
    %c4 = arith.constant 4 : index
    %c0_2 = arith.constant 0 : index
    %5 = vector.load %arg3[%c4, %c0_2] : memref<9x256xf32, #tpu.memory_space<vmem>>, vector<1x256xf32>
    %6 = arith.mulf %5, %4 : vector<1x256xf32>
    %c0_3 = arith.constant 0 : index
    %c0_4 = arith.constant 0 : index
    %7 = vector.load %arg3[%c0_3, %c0_4] : memref<9x256xf32, #tpu.memory_space<vmem>>, vector<1x256xf32>
    %8 = vector.extract_strided_slice %4 {offsets = [0, 239], sizes = [1, 17], strides = [1, 1]} : vector<1x256xf32> to vector<1x17xf32>
    %9 = vector.extract_strided_slice %4 {offsets = [0, 0], sizes = [1, 239], strides = [1, 1]} : vector<1x256xf32> to vector<1x239xf32>
    %10 = tpu.concatenate %8, %9 in 1 : vector<1x17xf32>, vector<1x239xf32> -> vector<1x256xf32>
    %11 = arith.mulf %7, %10 : vector<1x256xf32>
    %12 = arith.addf %6, %11 : vector<1x256xf32>
    %c1 = arith.constant 1 : index
    %c0_5 = arith.constant 0 : index
    %13 = vector.load %arg3[%c1, %c0_5] : memref<9x256xf32, #tpu.memory_space<vmem>>, vector<1x256xf32>
    %14 = vector.extract_strided_slice %4 {offsets = [0, 240], sizes = [1, 16], strides = [1, 1]} : vector<1x256xf32> to vector<1x16xf32>
    %15 = vector.extract_strided_slice %4 {offsets = [0, 0], sizes = [1, 240], strides = [1, 1]} : vector<1x256xf32> to vector<1x240xf32>
    %16 = tpu.concatenate %14, %15 in 1 : vector<1x16xf32>, vector<1x240xf32> -> vector<1x256xf32>
    %17 = arith.mulf %13, %16 : vector<1x256xf32>
    %18 = arith.addf %12, %17 : vector<1x256xf32>
    %c2 = arith.constant 2 : index
    %c0_6 = arith.constant 0 : index
    %19 = vector.load %arg3[%c2, %c0_6] : memref<9x256xf32, #tpu.memory_space<vmem>>, vector<1x256xf32>
    %20 = vector.extract_strided_slice %4 {offsets = [0, 241], sizes = [1, 15], strides = [1, 1]} : vector<1x256xf32> to vector<1x15xf32>
    %21 = vector.extract_strided_slice %4 {offsets = [0, 0], sizes = [1, 241], strides = [1, 1]} : vector<1x256xf32> to vector<1x241xf32>
    %22 = tpu.concatenate %20, %21 in 1 : vector<1x15xf32>, vector<1x241xf32> -> vector<1x256xf32>
    %23 = arith.mulf %19, %22 : vector<1x256xf32>
    %24 = arith.addf %18, %23 : vector<1x256xf32>
    %c3 = arith.constant 3 : index
    %c0_7 = arith.constant 0 : index
    %25 = vector.load %arg3[%c3, %c0_7] : memref<9x256xf32, #tpu.memory_space<vmem>>, vector<1x256xf32>
    %26 = vector.extract_strided_slice %4 {offsets = [0, 255], sizes = [1, 1], strides = [1, 1]} : vector<1x256xf32> to vector<1x1xf32>
    %27 = vector.extract_strided_slice %4 {offsets = [0, 0], sizes = [1, 255], strides = [1, 1]} : vector<1x256xf32> to vector<1x255xf32>
    %28 = tpu.concatenate %26, %27 in 1 : vector<1x1xf32>, vector<1x255xf32> -> vector<1x256xf32>
    %29 = arith.mulf %25, %28 : vector<1x256xf32>
    %30 = arith.addf %24, %29 : vector<1x256xf32>
    %c5 = arith.constant 5 : index
    %c0_8 = arith.constant 0 : index
    %31 = vector.load %arg3[%c5, %c0_8] : memref<9x256xf32, #tpu.memory_space<vmem>>, vector<1x256xf32>
    %32 = vector.extract_strided_slice %4 {offsets = [0, 1], sizes = [1, 255], strides = [1, 1]} : vector<1x256xf32> to vector<1x255xf32>
    %33 = vector.extract_strided_slice %4 {offsets = [0, 0], sizes = [1, 1], strides = [1, 1]} : vector<1x256xf32> to vector<1x1xf32>
    %34 = tpu.concatenate %32, %33 in 1 : vector<1x255xf32>, vector<1x1xf32> -> vector<1x256xf32>
    %35 = arith.mulf %31, %34 : vector<1x256xf32>
    %36 = arith.addf %30, %35 : vector<1x256xf32>
    %c6 = arith.constant 6 : index
    %c0_9 = arith.constant 0 : index
    %37 = vector.load %arg3[%c6, %c0_9] : memref<9x256xf32, #tpu.memory_space<vmem>>, vector<1x256xf32>
    %38 = vector.extract_strided_slice %4 {offsets = [0, 15], sizes = [1, 241], strides = [1, 1]} : vector<1x256xf32> to vector<1x241xf32>
    %39 = vector.extract_strided_slice %4 {offsets = [0, 0], sizes = [1, 15], strides = [1, 1]} : vector<1x256xf32> to vector<1x15xf32>
    %40 = tpu.concatenate %38, %39 in 1 : vector<1x241xf32>, vector<1x15xf32> -> vector<1x256xf32>
    %41 = arith.mulf %37, %40 : vector<1x256xf32>
    %42 = arith.addf %36, %41 : vector<1x256xf32>
    %c7 = arith.constant 7 : index
    %c0_10 = arith.constant 0 : index
    %43 = vector.load %arg3[%c7, %c0_10] : memref<9x256xf32, #tpu.memory_space<vmem>>, vector<1x256xf32>
    %44 = vector.extract_strided_slice %4 {offsets = [0, 16], sizes = [1, 240], strides = [1, 1]} : vector<1x256xf32> to vector<1x240xf32>
    %45 = vector.extract_strided_slice %4 {offsets = [0, 0], sizes = [1, 16], strides = [1, 1]} : vector<1x256xf32> to vector<1x16xf32>
    %46 = tpu.concatenate %44, %45 in 1 : vector<1x240xf32>, vector<1x16xf32> -> vector<1x256xf32>
    %47 = arith.mulf %43, %46 : vector<1x256xf32>
    %48 = arith.addf %42, %47 : vector<1x256xf32>
    %c8 = arith.constant 8 : index
    %c0_11 = arith.constant 0 : index
    %49 = vector.load %arg3[%c8, %c0_11] : memref<9x256xf32, #tpu.memory_space<vmem>>, vector<1x256xf32>
    %50 = vector.extract_strided_slice %4 {offsets = [0, 17], sizes = [1, 239], strides = [1, 1]} : vector<1x256xf32> to vector<1x239xf32>
    %51 = vector.extract_strided_slice %4 {offsets = [0, 0], sizes = [1, 17], strides = [1, 1]} : vector<1x256xf32> to vector<1x17xf32>
    %52 = tpu.concatenate %50, %51 in 1 : vector<1x239xf32>, vector<1x17xf32> -> vector<1x256xf32>
    %53 = arith.mulf %49, %52 : vector<1x256xf32>
    %54 = arith.addf %48, %53 : vector<1x256xf32>
    %c0_12 = arith.constant 0 : index
    %55 = memref.load %arg1[%c0_12] : memref<4xf32, #tpu.memory_space<smem>>
    %56 = vector.broadcast %55 : f32 to vector<1x256xf32>
    %57 = arith.mulf %54, %56 : vector<1x256xf32>
    %c1_13 = arith.constant 1 : index
    %58 = memref.load %arg1[%c1_13] : memref<4xf32, #tpu.memory_space<smem>>
    %59 = vector.broadcast %58 : f32 to vector<1x256xf32>
    %60 = arith.addf %57, %59 : vector<1x256xf32>
    %cst_14 = arith.constant 0.000000e+00 : f32
    %61 = vector.broadcast %cst_14 : f32 to vector<1x256xf32>
    %62 = arith.maximumf %60, %61 : vector<1x256xf32>
    %c2_15 = arith.constant 2 : index
    %63 = memref.load %arg1[%c2_15] : memref<4xf32, #tpu.memory_space<smem>>
    %64 = vector.broadcast %63 : f32 to vector<1x256xf32>
    %65 = arith.mulf %62, %64 : vector<1x256xf32>
    %cst_16 = arith.constant 0.000000e+00 : f32
    %66 = vector.broadcast %cst_16 : f32 to vector<1x256xf32>
    %67 = arith.subf %66, %65 : vector<1x256xf32>
    %68 = math.exp %67 : vector<1x256xf32>
    %cst_17 = arith.constant 1.000000e+00 : f32
    %69 = vector.broadcast %cst_17 : f32 to vector<1x256xf32>
    %70 = arith.addf %69, %68 : vector<1x256xf32>
    %cst_18 = arith.constant 1.000000e+00 : f32
    %71 = vector.broadcast %cst_18 : f32 to vector<1x256xf32>
    %72 = arith.divf %71, %70 : vector<1x256xf32>
    %73 = vector.broadcast %72 : vector<1x256xf32> to vector<8x256xf32>
    %74 = arith.addf %0, %73 : vector<8x256xf32>
    %c0_19 = arith.constant 0 : index
    %c0_20 = arith.constant 0 : index
    %75 = vector.load %arg2[%c0_19, %c0_20] : memref<8x8xf32, #tpu.memory_space<vmem>>, vector<8x8xf32>
    %cst_21 = arith.constant dense<0.000000e+00> : vector<8x256xf32>
    %76 = tpu.matmul %75, %74, %cst_21 {dimension_numbers = #tpu.dot_dimension_numbers<[1], [0], [0], [1], [0, 0, 1, 1], [], []>, precision = #tpu.contract_precision<fp32>} : vector<8x8xf32>, vector<8x256xf32>, vector<8x256xf32> -> vector<8x256xf32>
    %cst_22 = arith.constant 0.000000e+00 : f32
    %77 = vector.broadcast %cst_22 : f32 to vector<8x256xf32>
    %78 = arith.subf %77, %76 : vector<8x256xf32>
    %79 = math.exp %78 : vector<8x256xf32>
    %cst_23 = arith.constant 1.000000e+00 : f32
    %80 = vector.broadcast %cst_23 : f32 to vector<8x256xf32>
    %81 = arith.addf %80, %79 : vector<8x256xf32>
    %cst_24 = arith.constant 1.000000e+00 : f32
    %82 = vector.broadcast %cst_24 : f32 to vector<8x256xf32>
    %83 = arith.divf %82, %81 : vector<8x256xf32>
    %c0_25 = arith.constant 0 : index
    %c0_26 = arith.constant 0 : index
    %84 = vector.load %arg5[%c0_25, %c0_26] : memref<8x256xf32, #tpu.memory_space<vmem>>, vector<8x256xf32>
    tpu.vector_store %arg5[%c0_25, %c0_26], %83 {strides = array<i32>} : memref<8x256xf32, #tpu.memory_space<vmem>>, vector<8x256xf32>,
    return
  }
  func.func @transform_0(%arg0: i32) -> i32 {
    %c0_i32 = arith.constant 0 : i32
    %c0_i32_0 = arith.constant 0 : i32
    return %c0_i32 : i32
  }
  func.func @transform_1(%arg0: i32) -> (i32, i32) {
    %c0_i32 = arith.constant 0 : i32
    %c0_i32_0 = arith.constant 0 : i32
    %c0_i32_1 = arith.constant 0 : i32
    return %c0_i32, %c0_i32_0 : i32, i32
  }
  func.func @transform_2(%arg0: i32) -> (i32, i32) {
    %c0_i32 = arith.constant 0 : i32
    %c0_i32_0 = arith.constant 0 : i32
    %c0_i32_1 = arith.constant 0 : i32
    return %c0_i32, %c0_i32_0 : i32, i32
  }
  func.func @transform_3(%arg0: i32) -> (i32, i32) {
    %c0_i32 = arith.constant 0 : i32
    %c0_i32_0 = arith.constant 0 : i32
    return %c0_i32, %arg0 : i32, i32
  }
  func.func @transform_4(%arg0: i32) -> (i32, i32) {
    %c0_i32 = arith.constant 0 : i32
    %c0_i32_0 = arith.constant 0 : i32
    return %c0_i32, %arg0 : i32, i32
  }
}

</mosaic_0001>

<llo_original>
// kernel: tpu_custom_call.1
$region0: #{tpu_custom_call.1}
  #allocation0 [shape = 'u32[]', space=smem, size = 0x4, offset = 0x4, fixed_abs, tag = 'smem constant byte address 0x4 - core index']
  #allocation1 [shape = 'u32[144,128]{1,0:T(1,128)}', space=vmem, size = 0x12000, scoped, tag = 'internal scratch']
  %s0 = inlined_call_operand.hbm [shape: f32[4], index: 0, kind: input, shape index: {}]
  %s1 = inlined_call_operand.hbm [shape: f32[8,8], index: 1, kind: input, shape index: {}]
  %s2 = inlined_call_operand.hbm [shape: f32[9,256], index: 2, kind: input, shape index: {}]
  %s3 = inlined_call_operand.hbm [shape: f32[8,512], index: 3, kind: input, shape index: {}]
  %s4 = inlined_call_operand.hbm [shape: f32[8,512], index: 4, kind: output, shape index: {}]
  %s5 = sld [smem:[#allocation0]]
  $region65: #{tpu_custom_call.1} parent=0
    _
  %s7 = ssub.s32 1, %s5
  %s8 = scalar_select 0, %s7, %s5
  $region1: #{tpu_custom_call.1} parent=0
    #allocation2 [shape = 'u8[512]{0}', space=smem, size = 0x200, scoped, tag = 'input window, operand 0, single buffered']
    #allocation3 [shape = 's32[2]{0}', space=sflag, size = 0x8, scoped, tag = 'scoped memory for tpu_custom_call.1']
    #allocation4 [shape = 's32[2]{0}', space=sflag, size = 0x8, scoped, tag = 'scoped memory for tpu_custom_call.1']
    #allocation5 [shape = 's32[2]{0}', space=sflag, size = 0x8, scoped, tag = 'scoped memory for tpu_custom_call.1']
    #allocation6 [shape = 'u8[4096]{0}', space=vmem, size = 0x1000, scoped, tag = 'input window, operand 1, single buffered']
    #allocation7 [shape = 'u8[16384]{0}', space=vmem, size = 0x4000, scoped, tag = 'input window, operand 2, single buffered']
    #allocation8 [shape = 's32[1]{0}', space=sflag, size = 0x4, scoped, tag = 'scoped memory for tpu_custom_call.1']
    #allocation9 [shape = 'u8[16384]{0}', space=vmem, size = 0x4000, scoped, tag = 'input window, operand 3']
    #allocation10 [shape = 'u8[16384]{0}', space=vmem, size = 0x4000, scoped, tag = 'output window, operand 0']
    %9 = vsyncpa [#allocation5], 0
    %10 = vsyncpa [#allocation3], 0
    %11 = vsyncpa [#allocation8], 0
    %12 = vsyncpa [#allocation4], 0
    %s13 = scalar_lea.sflag [#allocation4], 1
    %14 = vsyncpa %s13, 0
    loop: start=0, step=1, limit=4
    $region2: #{tpu_custom_call.1} parent=1 // loop_pre_header
      _
    $region3: #{tpu_custom_call.1} parent=1 // loop_header
      %s16 = sphi 0, %s20
      %p17 = scmp.ge.s32.totalorder %s16, 4
      %s24 = sphi 0, %s24
      %s26 = sphi 0, %s24
      %s27 = sphi 0, %s26
      %s41 = sphi 0, %s27
      %s45 = sphi 0, %s45
      %s47 = sphi 0, %s45
      %s48 = sphi 0, %s47
      %s62 = sphi 0, %s48
      %s66 = sphi 0, %s66
      %s68 = sphi 0, %s66
      %s69 = sphi 0, %s68
      %s83 = sphi 0, %s69
      %s89 = sphi 0, %s91
      %s92 = sphi 0, %s89
      %s93 = sphi 0, %s92
      %s109 = sphi 0, %s93
      %s115 = sphi 0, %s117
      %s118 = sphi 0, %s115
      %s119 = sphi 0, %s118
      %s135 = sphi 0, %s119
    $region4: #{tpu_custom_call.1} parent=1 // loop_header_branch
      %19 = sbr.rel (%p17) target = $region8
    $region5: #{tpu_custom_call.1} parent=1 // loop_body
      %s21 = ssub.s32 %s16, 1
      %s22 = ssub.s32 %s16, 2
      %s23 = sadd.s32 %s16, 1
      %s25 = sadd.s32 %s24, 1
      %p28 = scmp.eq.s32.totalorder %s16, 1
      %p29 = scmp.ne.s32.totalorder %s24, %s26
      %p30 = scmp.eq.s32.totalorder %s16, 0
      %p31 = por %p29, %p30
      %p32 = scmp.ne.s32.totalorder %s24, %s26
      %p33 = scmp.eq.s32.totalorder %s21, 1
      %p34 = por %p32, %p33
      %p35 = scmp.ne.s32.totalorder %s26, %s27
      %p36 = scmp.eq.s32.totalorder %s21, 0
      %p37 = por %p35, %p36
      %p38 = scmp.ne.s32.totalorder %s26, %s27
      %p39 = scmp.eq.s32.totalorder %s22, 1
      %p40 = por %p38, %p39
      %p42 = scmp.ne.s32.totalorder %s27, %s41
      %p43 = scmp.eq.s32.totalorder %s22, 0
      %p44 = por %p42, %p43
      %s46 = sadd.s32 %s45, 1
      %p49 = scmp.eq.s32.totalorder %s16, 1
      %p50 = scmp.ne.s32.totalorder %s45, %s47
      %p51 = scmp.eq.s32.totalorder %s16, 0
      %p52 = por %p50, %p51
      %p53 = scmp.ne.s32.totalorder %s45, %s47
      %p54 = scmp.eq.s32.totalorder %s21, 1
      %p55 = por %p53, %p54
      %p56 = scmp.ne.s32.totalorder %s47, %s48
      %p57 = scmp.eq.s32.totalorder %s21, 0
      %p58 = por %p56, %p57
      %p59 = scmp.ne.s32.totalorder %s47, %s48
      %p60 = scmp.eq.s32.totalorder %s22, 1
      %p61 = por %p59, %p60
      %p63 = scmp.ne.s32.totalorder %s48, %s62
      %p64 = scmp.eq.s32.totalorder %s22, 0
      %p65 = por %p63, %p64
      %s67 = sadd.s32 %s66, 1
      %p70 = scmp.eq.s32.totalorder %s16, 1
      %p71 = scmp.ne.s32.totalorder %s66, %s68
      %p72 = scmp.eq.s32.totalorder %s16, 0
      %p73 = por %p71, %p72
      %p74 = scmp.ne.s32.totalorder %s66, %s68
      %p75 = scmp.eq.s32.totalorder %s21, 1
      %p76 = por %p74, %p75
      %p77 = scmp.ne.s32.totalorder %s68, %s69
      %p78 = scmp.eq.s32.totalorder %s21, 0
      %p79 = por %p77, %p78
      %p80 = scmp.ne.s32.totalorder %s68, %s69
      %p81 = scmp.eq.s32.totalorder %s22, 1
      %p82 = por %p80, %p81
      %p84 = scmp.ne.s32.totalorder %s69, %s83
      %p85 = scmp.eq.s32.totalorder %s22, 0
      %p86 = por %p84, %p85
      %s87 = ssub.s32 %s16, %s23
      %p88 = scmp.eq.s32.totalorder %s87, 0
      %s90 = sadd.s32 %s89, 1
      %s91 = scalar_select %p88, %s89, %s90
      %p94 = pneg %p88
      %p95 = scmp.eq.s32.totalorder %s16, 1
      %p96 = por %p94, %p95
      %p97 = scmp.ne.s32.totalorder %s89, %s92
      %p98 = scmp.eq.s32.totalorder %s16, 0
      %p99 = por %p97, %p98
      %p100 = scmp.ne.s32.totalorder %s89, %s92
      %p101 = scmp.eq.s32.totalorder %s21, 1
      %p102 = por %p100, %p101
      %p103 = scmp.ne.s32.totalorder %s92, %s93
      %p104 = scmp.eq.s32.totalorder %s21, 0
      %p105 = por %p103, %p104
      %p106 = scmp.ne.s32.totalorder %s92, %s93
      %p107 = scmp.eq.s32.totalorder %s22, 1
      %p108 = por %p106, %p107
      %p110 = scmp.ne.s32.totalorder %s93, %s109
      %p111 = scmp.eq.s32.totalorder %s22, 0
      %p112 = por %p110, %p111
      %s113 = ssub.s32 %s16, %s23
      %p114 = scmp.eq.s32.totalorder %s113, 0
      %s116 = sadd.s32 %s115, 1
      %s117 = scalar_select %p114, %s115, %s116
      %p120 = pneg %p114
      %p121 = scmp.eq.s32.totalorder %s16, 1
      %p122 = por %p120, %p121
      %p123 = scmp.ne.s32.totalorder %s115, %s118
      %p124 = scmp.eq.s32.totalorder %s16, 0
      %p125 = por %p123, %p124
      %p126 = scmp.ne.s32.totalorder %s115, %s118
      %p127 = scmp.eq.s32.totalorder %s21, 1
      %p128 = por %p126, %p127
      %p129 = scmp.ne.s32.totalorder %s118, %s119
      %p130 = scmp.eq.s32.totalorder %s21, 0
      %p131 = por %p129, %p130
      %p132 = scmp.ne.s32.totalorder %s118, %s119
      %p133 = scmp.eq.s32.totalorder %s22, 1
      %p134 = por %p132, %p133
      %p136 = scmp.ne.s32.totalorder %s119, %s135
      %p137 = scmp.eq.s32.totalorder %s22, 0
      %p138 = por %p136, %p137
      %p139 = scmp.le.s32.totalorder 1, %s16
      %p140 = scmp.lt.s32.totalorder %s16, 3
      %p141 = pnand %p139, %p140
      %p142 = pneg %p141
      // Predicated region
      $region9: #{tpu_custom_call.1} parent=5 // pred_check
        _
      $region10: #{tpu_custom_call.1} parent=5 // pred_check_branch
        %144 = sbr.rel (%p141) target = $region12
      $region11: #{tpu_custom_call.1} parent=5 // pred_region
        %s145 = ssub.s32 %s16, 1
        // Predicated region
        $region13: #{tpu_custom_call.1} parent=11 // pred_check
          %p146 = pneg %p37
        $region14: #{tpu_custom_call.1} parent=11 // pred_check_branch
          %148 = sbr.rel (%p146) target = $region16
        $region15: #{tpu_custom_call.1} parent=11 // pred_region
          %s150 = ssub.s32 16, 16
          %151 = vsyncadd [#allocation5], %s150
          %154 = dma.hbm_to_smem %s0, 16, [#allocation2], [#allocation5]
        $region16: #{tpu_custom_call.1} parent=11 // pred_fallthru
          _
        // Predicated region
        $region17: #{tpu_custom_call.1} parent=11 // pred_check
          %p155 = pneg %p58
        $region18: #{tpu_custom_call.1} parent=11 // pred_check_branch
          %157 = sbr.rel (%p155) target = $region20
        $region19: #{tpu_custom_call.1} parent=11 // pred_region
          %s159 = ssub.s32 128, 128
          %160 = vsyncadd [#allocation3], %s159
          %s162 = sshll.u32 [#allocation6], 4
          %s163 = int_to_ptr.vmem [resolvable:$true] %s162
          %165 = dma.hbm_to_vmem [thread:$0]  %s1, 128, %s163, [#allocation3]
        $region20: #{tpu_custom_call.1} parent=11 // pred_fallthru
          _
        // Predicated region
        $region21: #{tpu_custom_call.1} parent=11 // pred_check
          %p166 = pneg %p79
        $region22: #{tpu_custom_call.1} parent=11 // pred_check_branch
          %168 = sbr.rel (%p166) target = $region24
        $region23: #{tpu_custom_call.1} parent=11 // pred_region
          %s170 = ssub.s32 512, 512
          %171 = vsyncadd [#allocation8], %s170
          %s172 = sshll.u32 [#allocation7], 4
          %s173 = int_to_ptr.vmem [resolvable:$true] %s172
          %178 = dma.hbm_to_vmem [thread:$0]  %s2, 512, %s173, [#allocation8], 256, 256, 16
        $region24: #{tpu_custom_call.1} parent=11 // pred_fallthru
          _
      $region12: #{tpu_custom_call.1} parent=5 // pred_fallthru
        _
      %p179 = scmp.lt.s32.totalorder %s16, 2
      // Predicated region
      $region25: #{tpu_custom_call.1} parent=5 // pred_check
        %p180 = pneg %p179
      $region26: #{tpu_custom_call.1} parent=5 // pred_check_branch
        %182 = sbr.rel (%p180) target = $region28
      $region27: #{tpu_custom_call.1} parent=5 // pred_region
        // Predicated region
        $region29: #{tpu_custom_call.1} parent=27 // pred_check
          %p183 = pneg %p99
        $region30: #{tpu_custom_call.1} parent=27 // pred_check_branch
          %185 = sbr.rel (%p183) target = $region32
        $region31: #{tpu_custom_call.1} parent=27 // pred_region
          %s186 = sand.u32 %s16, 1
          %s187 = scalar_lea.sflag [#allocation3], %s186
          %s188 = sand.u32 %s89, 1
          %s189 = smul.addr %s188, 16
          %s190 = scalar_lea.vmem [#allocation9], %s189
          %s191 = smul.u32 2, %s16
          %s193 = ssub.s32 256, 256
          %194 = vsyncadd %s187, %s193
          %s195 = smul.addr %s191, 128
          %s196 = scalar_lea.hbm %s3, %s195
          %s198 = sshll.u32 %s190, 4
          %s199 = int_to_ptr.vmem [resolvable:$true] %s198
          %201 = dma.hbm_to_vmem [thread:$0]  %s196, 256, %s199, %s187
        $region32: #{tpu_custom_call.1} parent=27 // pred_fallthru
          _
      $region28: #{tpu_custom_call.1} parent=5 // pred_fallthru
        _
      %p202 = scmp.le.s32.totalorder 1, %s16
      %p203 = scmp.lt.s32.totalorder %s16, 3
      %p204 = pnand %p202, %p203
      %p205 = pneg %p204
      // Predicated region
      $region33: #{tpu_custom_call.1} parent=5 // pred_check
        _
      $region34: #{tpu_custom_call.1} parent=5 // pred_check_branch
        %207 = sbr.rel (%p204) target = $region36
      $region35: #{tpu_custom_call.1} parent=5 // pred_region
        %s208 = ssub.s32 %s16, 1
        // Predicated region
        $region37: #{tpu_custom_call.1} parent=35 // pred_check
          %p209 = pneg %p37
        $region38: #{tpu_custom_call.1} parent=35 // pred_check_branch
          %211 = sbr.rel (%p209) target = $region40
        $region39: #{tpu_custom_call.1} parent=35 // pred_region
          %212 = dma.done [#allocation5], 16
        $region40: #{tpu_custom_call.1} parent=35 // pred_fallthru
          _
        // Predicated region
        $region41: #{tpu_custom_call.1} parent=35 // pred_check
          %p213 = pneg %p58
        $region42: #{tpu_custom_call.1} parent=35 // pred_check_branch
          %215 = sbr.rel (%p213) target = $region44
        $region43: #{tpu_custom_call.1} parent=35 // pred_region
          %216 = dma.done [#allocation3], 128
        $region44: #{tpu_custom_call.1} parent=35 // pred_fallthru
          _
        // Predicated region
        $region45: #{tpu_custom_call.1} parent=35 // pred_check
          %p217 = pneg %p79
        $region46: #{tpu_custom_call.1} parent=35 // pred_check_branch
          %219 = sbr.rel (%p217) target = $region48
        $region47: #{tpu_custom_call.1} parent=35 // pred_region
          %220 = dma.done [#allocation8], 512
        $region48: #{tpu_custom_call.1} parent=35 // pred_fallthru
          _
        %s221 = sand.u32 %s21, 1
        %s222 = scalar_lea.sflag [#allocation3], %s221
        %s223 = sand.u32 %s92, 1
        %s224 = smul.addr %s223, 16
        %s225 = scalar_lea.vmem [#allocation9], %s224
        // Predicated region
        $region49: #{tpu_custom_call.1} parent=35 // pred_check
          %p226 = pneg %p105
        $region50: #{tpu_custom_call.1} parent=35 // pred_check_branch
          %228 = sbr.rel (%p226) target = $region52
        $region51: #{tpu_custom_call.1} parent=35 // pred_region
          %229 = dma.done %s222, 256
        $region52: #{tpu_custom_call.1} parent=35 // pred_fallthru
          _
        %230 = sfence
        %p231 = pneg %p37
        %p232 = pneg %p34
        %p233 = pneg %p58
        %p234 = pneg %p55
        %p235 = pneg %p79
        %p236 = pneg %p76
        %s237 = sand.u32 %s21, 1
        %s238 = scalar_lea.sflag [#allocation3], %s237
        %s239 = sand.u32 %s92, 1
        %s240 = smul.addr %s239, 16
        %s241 = scalar_lea.vmem [#allocation9], %s240
        %p242 = pneg %p105
        %p243 = pneg %p102
        %p244 = pneg %p131
        %p245 = pneg %p128
        %s246 = sand.u32 %s118, 1
        %s247 = scalar_lea.sflag [#allocation4], %s246
        %s248 = sand.u32 %s118, 1
        %s249 = smul.addr %s248, 16
        %s250 = scalar_lea.vmem [#allocation10], %s249
        %s251 = smul.u32 2, %s21
        %s252 = smul.u32 2, %s21
        %v253 = vld [vmem:[%s225] sm:$0xff]
        %v254 = vld [vmem:[%s225 + $0x8] sm:$0xff]
        %v255 = vrot.slane %v253, 4
        %v256 = vadd.f32 %v253, %v255
        %v257 = vrot.slane %v256, 2
        %v258 = vadd.f32 %v256, %v257
        %v259 = vrot.slane %v258, 1
        %v260 = vadd.f32 %v258, %v259
        %v261 = vrot.slane %v254, 4
        %v262 = vadd.f32 %v254, %v261
        %v263 = vrot.slane %v262, 2
        %v264 = vadd.f32 %v262, %v263
        %v265 = vrot.slane %v264, 1
        %v266 = vadd.f32 %v264, %v265
        %v267 = vmul.f32 %v260, 0.25
        %v268 = vmul.f32 %v266, 0.25
        %s269 = scalar_lea.vmem [#allocation7], 4
        %v270 = vld [vmem:[%s269] ss:$8 sm:$0x3]
        %v273 = vcombine.low %v267, %v268
        %v275 = vunpack.c.l.s4 1966171168
        %v276 = vunpack.c.0.s8 %v275
        %v277 = vlaneseq
        %v278 = vshrl.u32 %v277, 7
        %v279 = vsub.s32 %v276, %v278
        %v280 = vrot.slane %v273, %v279
        %v282 = vunpack.c.l.s4 1966171168
        %v283 = vunpack.c.0.s8 %v282
        %v284 = vlaneseq
        %v285 = vshrl.u32 %v284, 7
        %v286 = vsub.s32 %v283, %v285
        %v287 = vrot.slane %v280, %v286
        %v289 = vmul.f32 %v270, %v287
        %v290 = vld [vmem:[#allocation7] ss:$8 sm:$0x3]
        %291 = vrot.lane.b32.xlu0 %v268, 17
        %v292 = vpop.permute.xlu0 %291
        %294 = vrot.lane.b32.xlu0 %v267, 17
        %v295 = vpop.permute.xlu0 %294
        %vm296 = vcmask 138240
        %v297 = vsel %vm296, %v295, %v292
        %v299 = vsel %vm296, %v292, %v295
        %v301 = vcombine.low %v299, %v297
        %v303 = vunpack.c.l.s4 1966171168
        %v304 = vunpack.c.0.s8 %v303
        %v305 = vlaneseq
        %v306 = vshrl.u32 %v305, 7
        %v307 = vsub.s32 %v304, %v306
        %v308 = vrot.slane %v301, %v307
        %v310 = vunpack.c.l.s4 1966171168
        %v311 = vunpack.c.0.s8 %v310
        %v312 = vlaneseq
        %v313 = vshrl.u32 %v312, 7
        %v314 = vsub.s32 %v311, %v313
        %v315 = vrot.slane %v308, %v314
        %v317 = vmul.f32 %v290, %v315
        %v318 = vadd.f32 %v289, %v317
        %s319 = scalar_lea.vmem [#allocation7], 1
        %v320 = vld [vmem:[%s319] ss:$8 sm:$0x3]
        %321 = vrot.lane.b32.xlu0 %v268, 16
        %v322 = vpop.permute.xlu0 %321
        %324 = vrot.lane.b32.xlu0 %v267, 16
        %v325 = vpop.permute.xlu0 %324
        %vm326 = vcmask 130048
        %v327 = vsel %vm326, %v325, %v322
        %v329 = vsel %vm326, %v322, %v325
        %v331 = vcombine.low %v329, %v327
        %v333 = vunpack.c.l.s4 1966171168
        %v334 = vunpack.c.0.s8 %v333
        %v335 = vlaneseq
        %v336 = vshrl.u32 %v335, 7
        %v337 = vsub.s32 %v334, %v336
        %v338 = vrot.slane %v331, %v337
        %v340 = vunpack.c.l.s4 1966171168
        %v341 = vunpack.c.0.s8 %v340
        %v342 = vlaneseq
        %v343 = vshrl.u32 %v342, 7
        %v344 = vsub.s32 %v341, %v343
        %v345 = vrot.slane %v338, %v344
        %v347 = vmul.f32 %v320, %v345
        %v348 = vadd.f32 %v318, %v347
        %s349 = scalar_lea.vmem [#allocation7], 2
        %v350 = vld [vmem:[%s349] ss:$8 sm:$0x3]
        %351 = vrot.lane.b32.xlu0 %v268, 15
        %v352 = vpop.permute.xlu0 %351
        %354 = vrot.lane.b32.xlu0 %v267, 15
        %v355 = vpop.permute.xlu0 %354
        %vm356 = vcmask 121856
        %v357 = vsel %vm356, %v355, %v352
        %v359 = vsel %vm356, %v352, %v355
        %v361 = vcombine.low %v359, %v357
        %v363 = vunpack.c.l.s4 1966171168
        %v364 = vunpack.c.0.s8 %v363
        %v365 = vlaneseq
        %v366 = vshrl.u32 %v365, 7
        %v367 = vsub.s32 %v364, %v366
        %v368 = vrot.slane %v361, %v367
        %v370 = vunpack.c.l.s4 1966171168
        %v371 = vunpack.c.0.s8 %v370
        %v372 = vlaneseq
        %v373 = vshrl.u32 %v372, 7
        %v374 = vsub.s32 %v371, %v373
        %v375 = vrot.slane %v368, %v374
        %v377 = vmul.f32 %v350, %v375
        %v378 = vadd.f32 %v348, %v377
        %s379 = scalar_lea.vmem [#allocation7], 3
        %v380 = vld [vmem:[%s379] ss:$8 sm:$0x3]
        %381 = vrot.lane.b32.xlu0 %v268, 1
        %v382 = vpop.permute.xlu0 %381
        %384 = vrot.lane.b32.xlu0 %v267, 1
        %v385 = vpop.permute.xlu0 %384
        %vm386 = vcmask 7168
        %v387 = vsel %vm386, %v385, %v382
        %v389 = vsel %vm386, %v382, %v385
        %v391 = vcombine.low %v389, %v387
        %v393 = vunpack.c.l.s4 1966171168
        %v394 = vunpack.c.0.s8 %v393
        %v395 = vlaneseq
        %v396 = vshrl.u32 %v395, 7
        %v397 = vsub.s32 %v394, %v396
        %v398 = vrot.slane %v391, %v397
        %v400 = vunpack.c.l.s4 1966171168
        %v401 = vunpack.c.0.s8 %v400
        %v402 = vlaneseq
        %v403 = vshrl.u32 %v402, 7
        %v404 = vsub.s32 %v401, %v403
        %v405 = vrot.slane %v398, %v404
        %v407 = vmul.f32 %v380, %v405
        %v408 = vadd.f32 %v378, %v407
        %s409 = scalar_lea.vmem [#allocation7], 5
        %v410 = vld [vmem:[%s409] ss:$8 sm:$0x3]
        %411 = vrot.lane.b32.xlu0 %v267, 127
        %v412 = vpop.permute.xlu0 %411
        %413 = vrot.lane.b32.xlu0 %v268, 127
        %v414 = vpop.permute.xlu0 %413
        %vm415 = vcmask 1039360
        %v416 = vsel %vm415, %v412, %v414
        %v419 = vsel %vm415, %v414, %v412
        %v421 = vcombine.low %v416, %v419
        %v423 = vunpack.c.l.s4 1966171168
        %v424 = vunpack.c.0.s8 %v423
        %v425 = vlaneseq
        %v426 = vshrl.u32 %v425, 7
        %v427 = vsub.s32 %v424, %v426
        %v428 = vrot.slane %v421, %v427
        %v430 = vunpack.c.l.s4 1966171168
        %v431 = vunpack.c.0.s8 %v430
        %v432 = vlaneseq
        %v433 = vshrl.u32 %v432, 7
        %v434 = vsub.s32 %v431, %v433
        %v435 = vrot.slane %v428, %v434
        %v437 = vmul.f32 %v410, %v435
        %v438 = vadd.f32 %v408, %v437
        %s439 = scalar_lea.vmem [#allocation7], 6
        %v440 = vld [vmem:[%s439] ss:$8 sm:$0x3]
        %441 = vrot.lane.b32.xlu0 %v267, 113
        %v442 = vpop.permute.xlu0 %441
        %443 = vrot.lane.b32.xlu0 %v268, 113
        %v444 = vpop.permute.xlu0 %443
        %vm445 = vcmask 924672
        %v446 = vsel %vm445, %v442, %v444
        %v449 = vsel %vm445, %v444, %v442
        %v451 = vcombine.low %v446, %v449
        %v453 = vunpack.c.l.s4 1966171168
        %v454 = vunpack.c.0.s8 %v453
        %v455 = vlaneseq
        %v456 = vshrl.u32 %v455, 7
        %v457 = vsub.s32 %v454, %v456
        %v458 = vrot.slane %v451, %v457
        %v460 = vunpack.c.l.s4 1966171168
        %v461 = vunpack.c.0.s8 %v460
        %v462 = vlaneseq
        %v463 = vshrl.u32 %v462, 7
        %v464 = vsub.s32 %v461, %v463
        %v465 = vrot.slane %v458, %v464
        %v467 = vmul.f32 %v440, %v465
        %v468 = vadd.f32 %v438, %v467
        %s469 = scalar_lea.vmem [#allocation7], 7
        %v470 = vld [vmem:[%s469] ss:$8 sm:$0x3]
        %471 = vrot.lane.b32.xlu0 %v267, 112
        %v472 = vpop.permute.xlu0 %471
        %473 = vrot.lane.b32.xlu0 %v268, 112
        %v474 = vpop.permute.xlu0 %473
        %vm475 = vcmask 916480
        %v476 = vsel %vm475, %v472, %v474
        %v479 = vsel %vm475, %v474, %v472
        %v481 = vcombine.low %v476, %v479
        %v483 = vunpack.c.l.s4 1966171168
        %v484 = vunpack.c.0.s8 %v483
        %v485 = vlaneseq
        %v486 = vshrl.u32 %v485, 7
        %v487 = vsub.s32 %v484, %v486
        %v488 = vrot.slane %v481, %v487
        %v490 = vunpack.c.l.s4 1966171168
        %v491 = vunpack.c.0.s8 %v490
        %v492 = vlaneseq
        %v493 = vshrl.u32 %v492, 7
        %v494 = vsub.s32 %v491, %v493
        %v495 = vrot.slane %v488, %v494
        %v497 = vmul.f32 %v470, %v495
        %v498 = vadd.f32 %v468, %v497
        %s499 = scalar_lea.vmem [#allocation7], 16
        %v500 = vld [vmem:[%s499] ss:$8 sm:$0x3]
        %501 = vrot.lane.b32.xlu0 %v267, 111
        %v502 = vpop.permute.xlu0 %501
        %503 = vrot.lane.b32.xlu0 %v268, 111
        %v504 = vpop.permute.xlu0 %503
        %vm505 = vcmask 908288
        %v506 = vsel %vm505, %v502, %v504
        %v509 = vsel %vm505, %v504, %v502
        %v511 = vcombine.low %v506, %v509
        %v513 = vunpack.c.l.s4 1966171168
        %v514 = vunpack.c.0.s8 %v513
        %v515 = vlaneseq
        %v516 = vshrl.u32 %v515, 7
        %v517 = vsub.s32 %v514, %v516
        %v518 = vrot.slane %v511, %v517
        %v520 = vunpack.c.l.s4 1966171168
        %v521 = vunpack.c.0.s8 %v520
        %v522 = vlaneseq
        %v523 = vshrl.u32 %v522, 7
        %v524 = vsub.s32 %v521, %v523
        %v525 = vrot.slane %v518, %v524
        %v527 = vmul.f32 %v500, %v525
        %v528 = vadd.f32 %v498, %v527
        %s529 = sld [smem:[#allocation2]]
        %v530 = vstv %s529
        %v531 = vmul.f32 %v528, %v530
        %s532 = sld [smem:[#allocation2 + $0x1]]
        %v533 = vstv %s532
        %v534 = vadd.f32 %v531, %v533
        %v535 = vmax.f32 %v534, 0.0
        %s536 = sld [smem:[#allocation2 + $0x2]]
        %v537 = vstv %s536
        %v538 = vmul.f32 %v535, %v537
        %v539 = vsub.f32 0.0, %v538
        %v540 = vmul.f32 %v539, 1.442695
        %v541 = vpow.pop %v540
        %v542 = vadd.f32 %v541, 1.0
        %v543 = vrcp.pop %v542
        %v544 = vmul.f32 1.0, %v543
        %v546 = vlaneseq
        %v547 = vshrl.u32 %v546, 7
        %v548 = vsub.s32 0, %v547
        %v549 = vrot.slane %v544, %v548
        %v550 = vlaneseq
        %v551 = vshrl.u32 %v550, 7
        %v552 = vsub.s32 1, %v551
        %v553 = vrot.slane %v544, %v552
        %v556 = vadd.f32 %v253, %v549
        %v557 = vadd.f32 %v254, %v553
        %v558 = vld [vmem:[#allocation6] sm:$0xff]
        %vm559 = vcmask 64512
        %v561 = vsel %vm559, %v558, 0
        %v563 = vand.u32 %v557, 4294901760
        %564 = vmatprep.subr.mxu0 %v563
        %v565 = vand.u32 %v556, 4294901760
        %566 = vmatpush1.msra.mxu0 %v565
        %567 = vmatprep.subr.mxu0 0.0
        %568 = vmatpush1.msra.mxu0 0.0
        %569 = vmatprep.subr.mxu0 0.0
        %570 = vmatpush1.msra.mxu0 0.0
        %571 = vmatprep.subr.mxu0 0.0
        %572 = vmatpush1.msra.mxu0 0.0
        %573 = vmatprep.subr.mxu0 0.0
        %574 = vmatpush1.msra.mxu0 0.0
        %575 = vmatprep.subr.mxu0 0.0
        %576 = vmatpush1.msra.mxu0 0.0
        %577 = vmatprep.subr.mxu0 0.0
        %578 = vmatpush1.msra.mxu0 0.0
        %579 = vmatprep.subr.mxu0 0.0
        %580 = vmatpush1.msra.mxu0 0.0
        %581 = vmatprep.subr.mxu0 0.0
        %582 = vmatpush1.msra.mxu0 0.0
        %583 = vmatprep.subr.mxu0 0.0
        %584 = vmatpush1.msra.mxu0 0.0
        %585 = vmatprep.subr.mxu0 0.0
        %586 = vmatpush1.msra.mxu0 0.0
        %587 = vmatprep.subr.mxu0 0.0
        %588 = vmatpush1.msra.mxu0 0.0
        %589 = vmatprep.subr.mxu0 0.0
        %590 = vmatpush1.msra.mxu0 0.0
        %591 = vmatprep.subr.mxu0 0.0
        %592 = vmatpush1.msra.mxu0 0.0
        %593 = vmatprep.subr.mxu0 0.0
        %594 = vmatpush1.msra.mxu0 0.0
        %595 = vmatprep.subr.mxu0 0.0
        %596 = vmatpush1.msra.mxu0 0.0
        %597 = vmatprep.subr.mxu0 0.0
        %598 = vmatpush1.msra.mxu0 0.0
        %599 = vmatprep.subr.mxu0 0.0
        %600 = vmatpush1.msra.mxu0 0.0
        %601 = vmatprep.subr.mxu0 0.0
        %602 = vmatpush1.msra.mxu0 0.0
        %603 = vmatprep.subr.mxu0 0.0
        %604 = vmatpush1.msra.mxu0 0.0
        %605 = vmatprep.subr.mxu0 0.0
        %606 = vmatpush1.msra.mxu0 0.0
        %607 = vmatprep.subr.mxu0 0.0
        %608 = vmatpush1.msra.mxu0 0.0
        %609 = vmatprep.subr.mxu0 0.0
        %610 = vmatpush1.msra.mxu0 0.0
        %611 = vmatprep.subr.mxu0 0.0
        %612 = vmatpush1.msra.mxu0 0.0
        %613 = vmatprep.subr.mxu0 0.0
        %614 = vmatpush1.msra.mxu0 0.0
        %615 = vmatprep.subr.mxu0 0.0
        %616 = vmatpush1.msra.mxu0 0.0
        %617 = vmatprep.subr.mxu0 0.0
        %618 = vmatpush1.msra.mxu0 0.0
        %619 = vmatprep.subr.mxu0 0.0
        %620 = vmatpush1.msra.mxu0 0.0
        %621 = vmatprep.subr.mxu0 0.0
        %622 = vmatpush1.msra.mxu0 0.0
        %623 = vmatprep.subr.mxu0 0.0
        %624 = vmatpush1.msra.mxu0 0.0
        %625 = vmatprep.subr.mxu0 0.0
        %626 = vmatpush1.msra.mxu0 0.0
        %627 = vmatprep.subr.mxu0 0.0
        %628 = vmatpush1.msra.mxu0 0.0
        %629 = vmatprep.mubr.f32.mxu0 0.0
        %v630 = vand.u32 %v561, 4294901760
        %v631 = vsub.f32 %v561, %v630
        %v632 = vand.u32 %v631, 4294901760
        %v633 = vsub.f32 %v631, %v632
        %v634 = vand.u32 %v633, 4294901760
        %635 = vmatmul.mubr.f32.gmra.mrb[0].mxu0 %v634
        %v636 = vpop.f32.mrb[0].mxu0
        %v637 = vadd.f32 0.0, %v636
        %v638 = vpop.f32.mrb[0].mxu0
        %v639 = vadd.f32 0.0, %v638
        %640 = vdwg.mxu0
        %v641 = vand.u32 %v557, 4294901760
        %v642 = vsub.f32 %v557, %v641
        %v643 = vand.u32 %v642, 4294901760
        %v644 = vsub.f32 %v642, %v643
        %v645 = vand.u32 %v644, 4294901760
        %646 = vmatprep.subr.mxu0 %v645
        %v647 = vand.u32 %v556, 4294901760
        %v648 = vsub.f32 %v556, %v647
        %v649 = vand.u32 %v648, 4294901760
        %v650 = vsub.f32 %v648, %v649
        %v651 = vand.u32 %v650, 4294901760
        %652 = vmatpush1.msra.mxu0 %v651
        %653 = vmatprep.subr.mxu0 0.0
        %654 = vmatpush1.msra.mxu0 0.0
        %655 = vmatprep.subr.mxu0 0.0
        %656 = vmatpush1.msra.mxu0 0.0
        %657 = vmatprep.subr.mxu0 0.0
        %658 = vmatpush1.msra.mxu0 0.0
        %659 = vmatprep.subr.mxu0 0.0
        %660 = vmatpush1.msra.mxu0 0.0
        %661 = vmatprep.subr.mxu0 0.0
        %662 = vmatpush1.msra.mxu0 0.0
        %663 = vmatprep.subr.mxu0 0.0
        %664 = vmatpush1.msra.mxu0 0.0
        %665 = vmatprep.subr.mxu0 0.0
        %666 = vmatpush1.msra.mxu0 0.0
        %667 = vmatprep.subr.mxu0 0.0
        %668 = vmatpush1.msra.mxu0 0.0
        %669 = vmatprep.subr.mxu0 0.0
        %670 = vmatpush1.msra.mxu0 0.0
        %671 = vmatprep.subr.mxu0 0.0
        %672 = vmatpush1.msra.mxu0 0.0
        %673 = vmatprep.subr.mxu0 0.0
        %674 = vmatpush1.msra.mxu0 0.0
        %675 = vmatprep.subr.mxu0 0.0
        %676 = vmatpush1.msra.mxu0 0.0
        %677 = vmatprep.subr.mxu0 0.0
        %678 = vmatpush1.msra.mxu0 0.0
        %679 = vmatprep.subr.mxu0 0.0
        %680 = vmatpush1.msra.mxu0 0.0
        %681 = vmatprep.subr.mxu0 0.0
        %682 = vmatpush1.msra.mxu0 0.0
        %683 = vmatprep.subr.mxu0 0.0
        %684 = vmatpush1.msra.mxu0 0.0
        %685 = vmatprep.subr.mxu0 0.0
        %686 = vmatpush1.msra.mxu0 0.0
        %687 = vmatprep.subr.mxu0 0.0
        %688 = vmatpush1.msra.mxu0 0.0
        %689 = vmatprep.subr.mxu0 0.0
        %690 = vmatpush1.msra.mxu0 0.0
        %691 = vmatprep.subr.mxu0 0.0
        %692 = vmatpush1.msra.mxu0 0.0
        %693 = vmatprep.subr.mxu0 0.0
        %694 = vmatpush1.msra.mxu0 0.0
        %695 = vmatprep.subr.mxu0 0.0
        %696 = vmatpush1.msra.mxu0 0.0
        %697 = vmatprep.subr.mxu0 0.0
        %698 = vmatpush1.msra.mxu0 0.0
        %699 = vmatprep.subr.mxu0 0.0
        %700 = vmatpush1.msra.mxu0 0.0
        %701 = vmatprep.subr.mxu0 0.0
        %702 = vmatpush1.msra.mxu0 0.0
        %703 = vmatprep.subr.mxu0 0.0
        %704 = vmatpush1.msra.mxu0 0.0
        %705 = vmatprep.subr.mxu0 0.0
        %706 = vmatpush1.msra.mxu0 0.0
        %707 = vmatprep.subr.mxu0 0.0
        %708 = vmatpush1.msra.mxu0 0.0
        %709 = vmatprep.subr.mxu0 0.0
        %710 = vmatpush1.msra.mxu0 0.0
        %711 = vmatprep.subr.mxu0 0.0
        %712 = vmatpush1.msra.mxu0 0.0
        %713 = vmatprep.subr.mxu0 0.0
        %714 = vmatpush1.msra.mxu0 0.0
        %715 = vmatprep.mubr.f32.mxu0 0.0
        %v716 = vand.u32 %v561, 4294901760
        %717 = vmatmul.mubr.f32.gmra.mrb[0].mxu0 %v716
        %v718 = vpop.f32.mrb[0].mxu0
        %v719 = vadd.f32 %v637, %v718
        %v720 = vpop.f32.mrb[0].mxu0
        %v721 = vadd.f32 %v639, %v720
        %722 = vdwg.mxu0
        %v723 = vand.u32 %v557, 4294901760
        %v724 = vsub.f32 %v557, %v723
        %725 = vmatprep.subr.mxu0 %v724
        %v726 = vand.u32 %v556, 4294901760
        %v727 = vsub.f32 %v556, %v726
        %728 = vmatpush1.msra.mxu0 %v727
        %729 = vmatprep.subr.mxu0 0.0
        %730 = vmatpush1.msra.mxu0 0.0
        %731 = vmatprep.subr.mxu0 0.0
        %732 = vmatpush1.msra.mxu0 0.0
        %733 = vmatprep.subr.mxu0 0.0
        %734 = vmatpush1.msra.mxu0 0.0
        %735 = vmatprep.subr.mxu0 0.0
        %736 = vmatpush1.msra.mxu0 0.0
        %737 = vmatprep.subr.mxu0 0.0
        %738 = vmatpush1.msra.mxu0 0.0
        %739 = vmatprep.subr.mxu0 0.0
        %740 = vmatpush1.msra.mxu0 0.0
        %741 = vmatprep.subr.mxu0 0.0
        %742 = vmatpush1.msra.mxu0 0.0
        %743 = vmatprep.subr.mxu0 0.0
        %744 = vmatpush1.msra.mxu0 0.0
        %745 = vmatprep.subr.mxu0 0.0
        %746 = vmatpush1.msra.mxu0 0.0
        %747 = vmatprep.subr.mxu0 0.0
        %748 = vmatpush1.msra.mxu0 0.0
        %749 = vmatprep.subr.mxu0 0.0
        %750 = vmatpush1.msra.mxu0 0.0
        %751 = vmatprep.subr.mxu0 0.0
        %752 = vmatpush1.msra.mxu0 0.0
        %753 = vmatprep.subr.mxu0 0.0
        %754 = vmatpush1.msra.mxu0 0.0
        %755 = vmatprep.subr.mxu0 0.0
        %756 = vmatpush1.msra.mxu0 0.0
        %757 = vmatprep.subr.mxu0 0.0
        %758 = vmatpush1.msra.mxu0 0.0
        %759 = vmatprep.subr.mxu0 0.0
        %760 = vmatpush1.msra.mxu0 0.0
        %761 = vmatprep.subr.mxu0 0.0
        %762 = vmatpush1.msra.mxu0 0.0
        %763 = vmatprep.subr.mxu0 0.0
        %764 = vmatpush1.msra.mxu0 0.0
        %765 = vmatprep.subr.mxu0 0.0
        %766 = vmatpush1.msra.mxu0 0.0
        %767 = vmatprep.subr.mxu0 0.0
        %768 = vmatpush1.msra.mxu0 0.0
        %769 = vmatprep.subr.mxu0 0.0
        %770 = vmatpush1.msra.mxu0 0.0
        %771 = vmatprep.subr.mxu0 0.0
        %772 = vmatpush1.msra.mxu0 0.0
        %773 = vmatprep.subr.mxu0 0.0
        %774 = vmatpush1.msra.mxu0 0.0
        %775 = vmatprep.subr.mxu0 0.0
        %776 = vmatpush1.msra.mxu0 0.0
        %777 = vmatprep.subr.mxu0 0.0
        %778 = vmatpush1.msra.mxu0 0.0
        %779 = vmatprep.subr.mxu0 0.0
        %780 = vmatpush1.msra.mxu0 0.0
        %781 = vmatprep.subr.mxu0 0.0
        %782 = vmatpush1.msra.mxu0 0.0
        %783 = vmatprep.subr.mxu0 0.0
        %784 = vmatpush1.msra.mxu0 0.0
        %785 = vmatprep.subr.mxu0 0.0
        %786 = vmatpush1.msra.mxu0 0.0
        %787 = vmatprep.subr.mxu0 0.0
        %788 = vmatpush1.msra.mxu0 0.0
        %789 = vmatprep.subr.mxu0 0.0
        %790 = vmatpush1.msra.mxu0 0.0
        %791 = vmatprep.mubr.f32.mxu0 0.0
        %v792 = vand.u32 %v561, 4294901760
        %v793 = vsub.f32 %v561, %v792
        %794 = vmatmul.mubr.f32.gmra.mrb[0].mxu0 %v793
        %v795 = vpop.f32.mrb[0].mxu0
        %v796 = vadd.f32 %v719, %v795
        %v797 = vpop.f32.mrb[0].mxu0
        %v798 = vadd.f32 %v721, %v797
        %799 = vdwg.mxu0
        %v800 = vand.u32 %v557, 4294901760
        %801 = vmatprep.subr.mxu0 %v800
        %v802 = vand.u32 %v556, 4294901760
        %803 = vmatpush1.msra.mxu0 %v802
        %804 = vmatprep.subr.mxu0 0.0
        %805 = vmatpush1.msra.mxu0 0.0
        %806 = vmatprep.subr.mxu0 0.0
        %807 = vmatpush1.msra.mxu0 0.0
        %808 = vmatprep.subr.mxu0 0.0
        %809 = vmatpush1.msra.mxu0 0.0
        %810 = vmatprep.subr.mxu0 0.0
        %811 = vmatpush1.msra.mxu0 0.0
        %812 = vmatprep.subr.mxu0 0.0
        %813 = vmatpush1.msra.mxu0 0.0
        %814 = vmatprep.subr.mxu0 0.0
        %815 = vmatpush1.msra.mxu0 0.0
        %816 = vmatprep.subr.mxu0 0.0
        %817 = vmatpush1.msra.mxu0 0.0
        %818 = vmatprep.subr.mxu0 0.0
        %819 = vmatpush1.msra.mxu0 0.0
        %820 = vmatprep.subr.mxu0 0.0
        %821 = vmatpush1.msra.mxu0 0.0
        %822 = vmatprep.subr.mxu0 0.0
        %823 = vmatpush1.msra.mxu0 0.0
        %824 = vmatprep.subr.mxu0 0.0
        %825 = vmatpush1.msra.mxu0 0.0
        %826 = vmatprep.subr.mxu0 0.0
        %827 = vmatpush1.msra.mxu0 0.0
        %828 = vmatprep.subr.mxu0 0.0
        %829 = vmatpush1.msra.mxu0 0.0
        %830 = vmatprep.subr.mxu0 0.0
        %831 = vmatpush1.msra.mxu0 0.0
        %832 = vmatprep.subr.mxu0 0.0
        %833 = vmatpush1.msra.mxu0 0.0
        %834 = vmatprep.subr.mxu0 0.0
        %835 = vmatpush1.msra.mxu0 0.0
        %836 = vmatprep.subr.mxu0 0.0
        %837 = vmatpush1.msra.mxu0 0.0
        %838 = vmatprep.subr.mxu0 0.0
        %839 = vmatpush1.msra.mxu0 0.0
        %840 = vmatprep.subr.mxu0 0.0
        %841 = vmatpush1.msra.mxu0 0.0
        %842 = vmatprep.subr.mxu0 0.0
        %843 = vmatpush1.msra.mxu0 0.0
        %844 = vmatprep.subr.mxu0 0.0
        %845 = vmatpush1.msra.mxu0 0.0
        %846 = vmatprep.subr.mxu0 0.0
        %847 = vmatpush1.msra.mxu0 0.0
        %848 = vmatprep.subr.mxu0 0.0
        %849 = vmatpush1.msra.mxu0 0.0
        %850 = vmatprep.subr.mxu0 0.0
        %851 = vmatpush1.msra.mxu0 0.0
        %852 = vmatprep.subr.mxu0 0.0
        %853 = vmatpush1.msra.mxu0 0.0
        %854 = vmatprep.subr.mxu0 0.0
        %855 = vmatpush1.msra.mxu0 0.0
        %856 = vmatprep.subr.mxu0 0.0
        %857 = vmatpush1.msra.mxu0 0.0
        %858 = vmatprep.subr.mxu0 0.0
        %859 = vmatpush1.msra.mxu0 0.0
        %860 = vmatprep.subr.mxu0 0.0
        %861 = vmatpush1.msra.mxu0 0.0
        %862 = vmatprep.subr.mxu0 0.0
        %863 = vmatpush1.msra.mxu0 0.0
        %864 = vmatprep.subr.mxu0 0.0
        %865 = vmatpush1.msra.mxu0 0.0
        %866 = vmatprep.mubr.f32.mxu0 0.0
        %v867 = vand.u32 %v561, 4294901760
        %v868 = vsub.f32 %v561, %v867
        %v869 = vand.u32 %v868, 4294901760
        %870 = vmatmul.mubr.f32.gmra.mrb[0].mxu0 %v869
        %v871 = vpop.f32.mrb[0].mxu0
        %v872 = vadd.f32 %v796, %v871
        %v873 = vpop.f32.mrb[0].mxu0
        %v874 = vadd.f32 %v798, %v873
        %875 = vdwg.mxu0
        %v876 = vand.u32 %v557, 4294901760
        %v877 = vsub.f32 %v557, %v876
        %v878 = vand.u32 %v877, 4294901760
        %879 = vmatprep.subr.mxu0 %v878
        %v880 = vand.u32 %v556, 4294901760
        %v881 = vsub.f32 %v556, %v880
        %v882 = vand.u32 %v881, 4294901760
        %883 = vmatpush1.msra.mxu0 %v882
        %884 = vmatprep.subr.mxu0 0.0
        %885 = vmatpush1.msra.mxu0 0.0
        %886 = vmatprep.subr.mxu0 0.0
        %887 = vmatpush1.msra.mxu0 0.0
        %888 = vmatprep.subr.mxu0 0.0
        %889 = vmatpush1.msra.mxu0 0.0
        %890 = vmatprep.subr.mxu0 0.0
        %891 = vmatpush1.msra.mxu0 0.0
        %892 = vmatprep.subr.mxu0 0.0
        %893 = vmatpush1.msra.mxu0 0.0
        %894 = vmatprep.subr.mxu0 0.0
        %895 = vmatpush1.msra.mxu0 0.0
        %896 = vmatprep.subr.mxu0 0.0
        %897 = vmatpush1.msra.mxu0 0.0
        %898 = vmatprep.subr.mxu0 0.0
        %899 = vmatpush1.msra.mxu0 0.0
        %900 = vmatprep.subr.mxu0 0.0
        %901 = vmatpush1.msra.mxu0 0.0
        %902 = vmatprep.subr.mxu0 0.0
        %903 = vmatpush1.msra.mxu0 0.0
        %904 = vmatprep.subr.mxu0 0.0
        %905 = vmatpush1.msra.mxu0 0.0
        %906 = vmatprep.subr.mxu0 0.0
        %907 = vmatpush1.msra.mxu0 0.0
        %908 = vmatprep.subr.mxu0 0.0
        %909 = vmatpush1.msra.mxu0 0.0
        %910 = vmatprep.subr.mxu0 0.0
        %911 = vmatpush1.msra.mxu0 0.0
        %912 = vmatprep.subr.mxu0 0.0
        %913 = vmatpush1.msra.mxu0 0.0
        %914 = vmatprep.subr.mxu0 0.0
        %915 = vmatpush1.msra.mxu0 0.0
        %916 = vmatprep.subr.mxu0 0.0
        %917 = vmatpush1.msra.mxu0 0.0
        %918 = vmatprep.subr.mxu0 0.0
        %919 = vmatpush1.msra.mxu0 0.0
        %920 = vmatprep.subr.mxu0 0.0
        %921 = vmatpush1.msra.mxu0 0.0
        %922 = vmatprep.subr.mxu0 0.0
        %923 = vmatpush1.msra.mxu0 0.0
        %924 = vmatprep.subr.mxu0 0.0
        %925 = vmatpush1.msra.mxu0 0.0
        %926 = vmatprep.subr.mxu0 0.0
        %927 = vmatpush1.msra.mxu0 0.0
        %928 = vmatprep.subr.mxu0 0.0
        %929 = vmatpush1.msra.mxu0 0.0
        %930 = vmatprep.subr.mxu0 0.0
        %931 = vmatpush1.msra.mxu0 0.0
        %932 = vmatprep.subr.mxu0 0.0
        %933 = vmatpush1.msra.mxu0 0.0
        %934 = vmatprep.subr.mxu0 0.0
        %935 = vmatpush1.msra.mxu0 0.0
        %936 = vmatprep.subr.mxu0 0.0
        %937 = vmatpush1.msra.mxu0 0.0
        %938 = vmatprep.subr.mxu0 0.0
        %939 = vmatpush1.msra.mxu0 0.0
        %940 = vmatprep.subr.mxu0 0.0
        %941 = vmatpush1.msra.mxu0 0.0
        %942 = vmatprep.subr.mxu0 0.0
        %943 = vmatpush1.msra.mxu0 0.0
        %944 = vmatprep.subr.mxu0 0.0
        %945 = vmatpush1.msra.mxu0 0.0
        %946 = vmatprep.mubr.f32.mxu0 0.0
        %v947 = vand.u32 %v561, 4294901760
        %948 = vmatmul.mubr.f32.gmra.mrb[0].mxu0 %v947
        %v949 = vpop.f32.mrb[0].mxu0
        %v950 = vadd.f32 %v872, %v949
        %v951 = vpop.f32.mrb[0].mxu0
        %v952 = vadd.f32 %v874, %v951
        %953 = vdwg.mxu0
        %v954 = vand.u32 %v557, 4294901760
        %955 = vmatprep.subr.mxu0 %v954
        %v956 = vand.u32 %v556, 4294901760
        %957 = vmatpush1.msra.mxu0 %v956
        %958 = vmatprep.subr.mxu0 0.0
        %959 = vmatpush1.msra.mxu0 0.0
        %960 = vmatprep.subr.mxu0 0.0
        %961 = vmatpush1.msra.mxu0 0.0
        %962 = vmatprep.subr.mxu0 0.0
        %963 = vmatpush1.msra.mxu0 0.0
        %964 = vmatprep.subr.mxu0 0.0
        %965 = vmatpush1.msra.mxu0 0.0
        %966 = vmatprep.subr.mxu0 0.0
        %967 = vmatpush1.msra.mxu0 0.0
        %968 = vmatprep.subr.mxu0 0.0
        %969 = vmatpush1.msra.mxu0 0.0
        %970 = vmatprep.subr.mxu0 0.0
        %971 = vmatpush1.msra.mxu0 0.0
        %972 = vmatprep.subr.mxu0 0.0
        %973 = vmatpush1.msra.mxu0 0.0
        %974 = vmatprep.subr.mxu0 0.0
        %975 = vmatpush1.msra.mxu0 0.0
        %976 = vmatprep.subr.mxu0 0.0
        %977 = vmatpush1.msra.mxu0 0.0
        %978 = vmatprep.subr.mxu0 0.0
        %979 = vmatpush1.msra.mxu0 0.0
        %980 = vmatprep.subr.mxu0 0.0
        %981 = vmatpush1.msra.mxu0 0.0
        %982 = vmatprep.subr.mxu0 0.0
        %983 = vmatpush1.msra.mxu0 0.0
        %984 = vmatprep.subr.mxu0 0.0
        %985 = vmatpush1.msra.mxu0 0.0
        %986 = vmatprep.subr.mxu0 0.0
        %987 = vmatpush1.msra.mxu0 0.0
        %988 = vmatprep.subr.mxu0 0.0
        %989 = vmatpush1.msra.mxu0 0.0
        %990 = vmatprep.subr.mxu0 0.0
        %991 = vmatpush1.msra.mxu0 0.0
        %992 = vmatprep.subr.mxu0 0.0
        %993 = vmatpush1.msra.mxu0 0.0
        %994 = vmatprep.subr.mxu0 0.0
        %995 = vmatpush1.msra.mxu0 0.0
        %996 = vmatprep.subr.mxu0 0.0
        %997 = vmatpush1.msra.mxu0 0.0
        %998 = vmatprep.subr.mxu0 0.0
        %999 = vmatpush1.msra.mxu0 0.0
        %1000 = vmatprep.subr.mxu0 0.0
        %1001 = vmatpush1.msra.mxu0 0.0
        %1002 = vmatprep.subr.mxu0 0.0
        %1003 = vmatpush1.msra.mxu0 0.0
        %1004 = vmatprep.subr.mxu0 0.0
        %1005 = vmatpush1.msra.mxu0 0.0
        %1006 = vmatprep.subr.mxu0 0.0
        %1007 = vmatpush1.msra.mxu0 0.0
        %1008 = vmatprep.subr.mxu0 0.0
        %1009 = vmatpush1.msra.mxu0 0.0
        %1010 = vmatprep.subr.mxu0 0.0
        %1011 = vmatpush1.msra.mxu0 0.0
        %1012 = vmatprep.subr.mxu0 0.0
        %1013 = vmatpush1.msra.mxu0 0.0
        %1014 = vmatprep.subr.mxu0 0.0
        %1015 = vmatpush1.msra.mxu0 0.0
        %1016 = vmatprep.subr.mxu0 0.0
        %1017 = vmatpush1.msra.mxu0 0.0
        %1018 = vmatprep.subr.mxu0 0.0
        %1019 = vmatpush1.msra.mxu0 0.0
        %1020 = vmatprep.mubr.f32.mxu0 0.0
        %v1021 = vand.u32 %v561, 4294901760
        %1022 = vmatmul.mubr.f32.gmra.mrb[0].mxu0 %v1021
        %v1023 = vpop.f32.mrb[0].mxu0
        %v1024 = vadd.f32 %v950, %v1023
        %v1025 = vpop.f32.mrb[0].mxu0
        %v1026 = vadd.f32 %v952, %v1025
        %1027 = vdwg.mxu0
        %v1028 = vsub.f32 0.0, %v1024
        %v1029 = vsub.f32 0.0, %v1026
        %v1030 = vmul.f32 %v1028, 1.442695
        %v1031 = vpow.pop %v1030
        %v1032 = vmul.f32 %v1029, 1.442695
        %v1033 = vpow.pop %v1032
        %v1034 = vadd.f32 %v1031, 1.0
        %v1035 = vadd.f32 %v1033, 1.0
        %v1036 = vrcp.pop %v1034
        %v1037 = vmul.f32 1.0, %v1036
        %v1038 = vrcp.pop %v1035
        %v1039 = vmul.f32 1.0, %v1038
        %1040 = vst [vmem:[%s250] sm:$0xff] %v1037
        %1041 = vst [vmem:[%s250 + $0x8] sm:$0xff] %v1039
        %s1042 = sand.u32 %s118, 1
        %s1043 = scalar_lea.sflag [#allocation4], %s1042
        %s1044 = sand.u32 %s118, 1
        %s1045 = smul.addr %s1044, 16
        %s1046 = scalar_lea.vmem [#allocation10], %s1045
        // Predicated region
        $region53: #{tpu_custom_call.1} parent=35 // pred_check
          %p1047 = pneg %p128
        $region54: #{tpu_custom_call.1} parent=35 // pred_check_branch
          %1049 = sbr.rel (%p1047) target = $region56
        $region55: #{tpu_custom_call.1} parent=35 // pred_region
          %s1050 = smul.u32 2, %s21
          %s1052 = ssub.s32 256, 256
          %1053 = vsyncadd %s1043, %s1052
          %s1054 = smul.addr %s1050, 128
          %s1055 = scalar_lea.hbm %s4, %s1054
          %s1057 = sshll.u32 %s1046, 4
          %s1058 = int_to_ptr.vmem [resolvable:$true] %s1057
          %1060 = dma.vmem_to_hbm [thread:$0]  %s1058, 256, %s1055, %s1043
        $region56: #{tpu_custom_call.1} parent=35 // pred_fallthru
          _
      $region36: #{tpu_custom_call.1} parent=5 // pred_fallthru
        _
      %p1061 = scmp.le.s32.totalorder 2, %s16
      // Predicated region
      $region57: #{tpu_custom_call.1} parent=5 // pred_check
        %p1062 = pneg %p1061
      $region58: #{tpu_custom_call.1} parent=5 // pred_check_branch
        %1064 = sbr.rel (%p1062) target = $region60
      $region59: #{tpu_custom_call.1} parent=5 // pred_region
        %s1065 = ssub.s32 %s16, 2
        // Predicated region
        $region61: #{tpu_custom_call.1} parent=59 // pred_check
          %p1066 = pneg %p134
        $region62: #{tpu_custom_call.1} parent=59 // pred_check_branch
          %1068 = sbr.rel (%p1066) target = $region64
        $region63: #{tpu_custom_call.1} parent=59 // pred_region
          %s1069 = sand.u32 %s119, 1
          %s1070 = scalar_lea.sflag [#allocation4], %s1069
          %s1071 = sand.u32 %s119, 1
          %s1072 = smul.addr %s1071, 16
          %s1073 = scalar_lea.vmem [#allocation10], %s1072
          %1074 = dma.done %s1070, 256
        $region64: #{tpu_custom_call.1} parent=59 // pred_fallthru
          _
      $region60: #{tpu_custom_call.1} parent=5 // pred_fallthru
        _
    $region6: #{tpu_custom_call.1} parent=1 // loop_footer
      %s20 = sadd.s32 1, %s16
    $region7: #{tpu_custom_call.1} parent=1 // loop_footer_branch
      %15 = sbr.rel target = $region3
    $region8: #{tpu_custom_call.1} parent=1 // loop_exit
      _
    %1075 = vsyncpa [#allocation3], 1
    %s1076 = scalar_lea.sflag [#allocation3], 1
    %1077 = vsyncpa %s1076, 1
    %1078 = vsyncpa [#allocation8], 1
    %1079 = vsyncpa [#allocation4], 1
    %s1080 = scalar_lea.sflag [#allocation4], 1
    %1081 = vsyncpa %s1080, 1
    %1082 = vsyncpa [#allocation5], 1
    %s1083 = scalar_lea.sflag [#allocation5], 1
    %1084 = vsyncpa %s1083, 1

</llo_original>
